<compile_context>
chip_gen: v5e
topology: v5e:2x2
jax: 0.10.0
libtpu: 0.0.40
codegen_flags: <defaults>
</compile_context>

<pallas_src>
import functools

import jax
import jax.numpy as jnp
from jax import lax
from jax.experimental import pallas as pl
from jax.experimental.pallas import tpu as pltpu

_LANE = 128     # lane-dense output / MXU N dim
_SUBLANE = 8    # f32 sublane tile (second-to-last dim / weight split row)


def _round_up(n, m):
    return ((n + m - 1) // m) * m


def _pad2d(a, rows, cols):
    r, c = a.shape
    if (r, c) == (rows, cols):            # short-circuit: no HBM copy
        return a
    return jnp.zeros((rows, cols), a.dtype).at[:r, :c].set(a)


def _vmem_limit(bytes_needed):
    # Floor at the smallest default (v5e 16 MiB), cap at v7x physical 64 MiB.
    return int(min(64 * 1024 * 1024,
                   max(16 * 1024 * 1024, 2 * bytes_needed + (4 << 20))))


def pack_params(weight, bias):
    """Pack/pad parameters ONCE (outside the hot path).

    weight: [I+H, H], bias: [1, H]  ->  w_p: [Ip+Hp, Hp], b_p: [1, Hp]
    x-rows land at [0:I], h-rows at [Ip:Ip+H]; padded rows/cols are zero so
    the padded lanes of the result are tanh(0)=0 and get sliced away.
    """
    H = weight.shape[1]
    I = weight.shape[0] - H
    Ip = _round_up(I, _SUBLANE)
    Hp = _round_up(H, _LANE)
    w_p = jnp.zeros((Ip + Hp, Hp), weight.dtype)
    w_p = w_p.at[:I, :H].set(weight[:I])
    w_p = w_p.at[Ip:Ip + H, :H].set(weight[I:])
    b_p = jnp.zeros((1, Hp), bias.dtype).at[:, :H].set(bias)
    return w_p, b_p


# ----------------------------- single step ---------------------------------


def _cell_kernel(i_split, use_bf16, x_ref, h_ref, w_ref, b_ref, out_ref):
    # Static, sublane-aligned views of the packed weight: zero-cost slices.
    wx = w_ref[:i_split, :]                      # [Ip, Hp]
    wh = w_ref[i_split:, :]                      # [Hp, Hp]
    x = x_ref[...]
    h = h_ref[...]
    if use_bf16:                                 # bf16 MXU operands, f32 acc
        x = x.astype(jnp.bfloat16)
        h = h.astype(jnp.bfloat16)
        wx = wx.astype(jnp.bfloat16)
        wh = wh.astype(jnp.bfloat16)
    acc = jnp.dot(x, wx, preferred_element_type=jnp.float32)
    acc = acc + jnp.dot(h, wh, preferred_element_type=jnp.float32)
    acc = acc + b_ref[...]                       # [1, Hp] broadcasts over batch
    out_ref[...] = jnp.tanh(acc).astype(out_ref.dtype)


@functools.partial(jax.jit, static_argnames=("use_bf16",))
def rnn_simple_cell(x, state_old, weight, bias, *, use_bf16=False):
    """Pallas implementation of RNNsimpleCell.forward (single step).

    x: [B, I], state_old: [B, H], weight: [I+H, H], bias: [1, H].
    Returns state_new: [B, H].
    NOTE: for repeated use, prefer pack_params() once + the sequence kernel;
    this API-faithful wrapper re-packs the weight per call.
    """
    B, I = x.shape
    H = state_old.shape[1]
    assert weight.shape == (I + H, H)
    assert bias.shape == (1, H)

    w_p, b_p = pack_params(weight, bias)
    Hp = w_p.shape[1]
    Ip = w_p.shape[0] - Hp
    Bp = _round_up(B, _SUBLANE)

    x_p = _pad2d(x, Bp, Ip)
    h_p = _pad2d(state_old, Bp, Hp)

    needed = 4 * (Bp * Ip + 2 * Bp * Hp + (Ip + Hp) * Hp + Hp)
    out = pl.pallas_call(
        functools.partial(_cell_kernel, Ip, use_bf16),
        out_shape=jax.ShapeDtypeStruct((Bp, Hp), x.dtype),
        in_specs=[pl.BlockSpec(memory_space=pltpu.MemorySpace.VMEM)] * 4,
        out_specs=pl.BlockSpec(memory_space=pltpu.MemorySpace.VMEM),
        compiler_params=pltpu.CompilerParams(
            vmem_limit_bytes=_vmem_limit(needed)),
    )(x_p, h_p, w_p, b_p)
    return out[:B, :H]


# --------------------------- fused time sequence ----------------------------


def _seq_kernel(i_split, use_bf16,
                x_ref, h0_ref, w_ref, b_ref, out_ref, xproj_scr, h_scr):
    tb, bb, ip = x_ref.shape
    hp = out_ref.shape[-1]

    # Re-init the carried hidden state at the start of each batch chunk.
    @pl.when(pl.program_id(1) == 0)
    def _():
        h_scr[...] = h0_ref[...].astype(jnp.float32)

    wx = w_ref[:i_split, :]                      # [Ip, Hp]
    wh = w_ref[i_split:, :]                      # [Hp, Hp]
    x_flat = x_ref[...].reshape(tb * bb, ip)     # merge major dims (free)
    if use_bf16:
        wx = wx.astype(jnp.bfloat16)
        wh = wh.astype(jnp.bfloat16)
        x_flat = x_flat.astype(jnp.bfloat16)

    # Hoisted, non-recurrent input projection for the whole chunk:
    # one MXU matmul with M = TB*Bb, bias folded in here.
    xproj = jnp.dot(x_flat, wx, preferred_element_type=jnp.float32)
    xproj = xproj + b_ref[...]
    xproj_scr[...] = xproj.reshape(tb, bb, hp)

    def step(t, carry):
        h = h_scr[...]
        hd = h.astype(jnp.bfloat16) if use_bf16 else h
        h_new = jnp.tanh(
            xproj_scr[t]
            + jnp.dot(hd, wh, preferred_element_type=jnp.float32))
        h_scr[...] = h_new                       # carry hidden state in VMEM
        out_ref[t] = h_new.astype(out_ref.dtype)
        return carry

    lax.fori_loop(0, tb, step, 0, unroll=True)   # short serial chain, unrolled


@functools.partial(jax.jit,
                   static_argnames=("time_block", "batch_block", "use_bf16"))
def rnn_simple_cell_sequence(xs, state0, w_packed, b_packed, *,
                             time_block=8, batch_block=256, use_bf16=False):
    """Run T recurrent steps of the cell in ONE pallas_call.

    xs: [T, B, I], state0: [B, H], (w_packed, b_packed) = pack_params(W, b).
    Returns hs: [T, B, H], the hidden state after each step.
    Grid = (batch chunks ["parallel"], time chunks ["arbitrary"]); W/b/h0 use
    constant index maps and stay resident in VMEM for the whole sequence.
    """
    T, B, I = xs.shape
    H = state0.shape[1]
    Hp = w_packed.shape[1]
    Ip = w_packed.shape[0] - Hp
    assert Ip >= I and Hp >= H and b_packed.shape == (1, Hp)

    Bp = _round_up(B, _SUBLANE)
    Bb = min(_round_up(batch_block, _SUBLANE), Bp)   # batch rows per core/chunk
    Bpad = _round_up(Bp, Bb)
    n_b = Bpad // Bb

    TB = max(1, min(time_block, T))                  # time steps per grid step
    Tp = _round_up(T, TB)
    n_t = Tp // TB

    if (Tp, Bpad, Ip) != (T, B, I):                  # short-circuit when aligned
        xs_p = jnp.zeros((Tp, Bpad, Ip), xs.dtype).at[:T, :B, :I].set(xs)
    else:
        xs_p = xs
    h0_p = _pad2d(state0, Bpad, Hp)

    itemsize = 4
    resident = ((Ip + Hp) * Hp + Hp + Bb * Hp) * itemsize
    streamed = 2 * (TB * Bb * Ip + TB * Bb * Hp) * itemsize  # double-buffered
    scratch = (TB * Bb * Hp + Bb * Hp) * itemsize
    vmem_limit = _vmem_limit(resident + streamed + scratch)

    out = pl.pallas_call(
        functools.partial(_seq_kernel, Ip, use_bf16),
        out_shape=jax.ShapeDtypeStruct((Tp, Bpad, Hp), xs.dtype),
        grid=(n_b, n_t),
        in_specs=[
            pl.BlockSpec((TB, Bb, Ip), lambda b, t: (t, b, 0)),   # x chunk
            pl.BlockSpec((Bb, Hp), lambda b, t: (b, 0)),          # h0 (resident)
            pl.BlockSpec((Ip + Hp, Hp), lambda b, t: (0, 0)),     # W  (resident)
            pl.BlockSpec((1, Hp), lambda b, t: (0, 0)),           # b  (resident)
        ],
        out_specs=pl.BlockSpec((TB, Bb, Hp), lambda b, t: (t, b, 0)),
        scratch_shapes=[
            pltpu.VMEM((TB, Bb, Hp), jnp.float32),   # hoisted x-projection
            pltpu.VMEM((Bb, Hp), jnp.float32),       # carried hidden state
        ],
        compiler_params=pltpu.CompilerParams(
            dimension_semantics=("parallel", "arbitrary"),
            vmem_limit_bytes=vmem_limit),
    )(xs_p, h0_p, w_packed, b_packed)
    return out[:T, :B, :H]


if __name__ == "__main__":
    # Small shapes consistent with the module: batch=8, input=16, hidden=32.
    B, I, H, T = 8, 16, 32, 8
    key = jax.random.PRNGKey(0)
    k_x, k_h, k_w, k_s = jax.random.split(key, 4)

    x = jax.random.normal(k_x, (B, I), dtype=jnp.float32)
    state_old = jax.random.normal(k_h, (B, H), dtype=jnp.float32)
    # Deterministic init mirroring the module: W ~ N(0, 1/(I+H)), b = 0.
    weight = jax.random.normal(k_w, (I + H, H), dtype=jnp.float32) / jnp.sqrt(
        float(I + H))
    bias = jnp.zeros((1, H), dtype=jnp.float32)

    # --- single step (matches RNNsimpleCell.forward exactly, f32 parity) ---
    state_new = jax.block_until_ready(
        rnn_simple_cell(x, state_old, weight, bias))
    ref = jnp.tanh(jnp.concatenate([x, state_old], axis=1) @ weight + bias)
    assert state_new.shape == (B, H)
    assert jnp.allclose(state_new, ref, atol=1e-5, rtol=1e-5)

    # --- fused recurrent sequence: pack params once, T steps in one call ---
    xs = jax.random.normal(k_s, (T, B, I), dtype=jnp.float32)
    w_p, b_p = pack_params(weight, bias)
    hs = jax.block_until_ready(
        rnn_simple_cell_sequence(xs, state_old, w_p, b_p))

    def _ref_step(h, x_t):
        h_new = jnp.tanh(jnp.concatenate([x_t, h], axis=1) @ weight + bias)
        return h_new, h_new

    _, hs_ref = jax.lax.scan(_ref_step, state_old, xs)
    assert hs.shape == (T, B, H)
    assert jnp.allclose(hs, hs_ref, atol=1e-4, rtol=1e-4)

    # --- optional bf16-MXU path (3x MXU throughput; looser tolerance) ---
    hs_bf16 = jax.block_until_ready(
        rnn_simple_cell_sequence(xs, state_old, w_p, b_p, use_bf16=True))
    assert jnp.allclose(hs_bf16, hs_ref, atol=5e-2, rtol=5e-2)

    print("KERNEL_OK")
</pallas_src>

<mosaic_0001>
module attributes {stable_mosaic.version = 11 : i64} {
  func.func @_cell_kernel(%arg0: memref<8x16xf32, #tpu.memory_space<vmem>>, %arg1: memref<8x128xf32, #tpu.memory_space<vmem>>, %arg2: memref<144x128xf32, #tpu.memory_space<vmem>>, %arg3: memref<1x128xf32, #tpu.memory_space<vmem>>, %arg4: memref<8x128xf32, #tpu.memory_space<vmem>>) attributes {dimension_semantics = [], scalar_prefetch = 0 : i64, scratch_operands = 0 : i64, tpu.core_type = #tpu.core_type<tc>} {
    %c0 = arith.constant 0 : index
    %c0_0 = arith.constant 0 : index
    %0 = vector.load %arg2[%c0, %c0_0] : memref<144x128xf32, #tpu.memory_space<vmem>>, vector<16x128xf32>
    %c16 = arith.constant 16 : index
    %c0_1 = arith.constant 0 : index
    %1 = vector.load %arg2[%c16, %c0_1] : memref<144x128xf32, #tpu.memory_space<vmem>>, vector<128x128xf32>
    %c0_2 = arith.constant 0 : index
    %c0_3 = arith.constant 0 : index
    %2 = vector.load %arg0[%c0_2, %c0_3] : memref<8x16xf32, #tpu.memory_space<vmem>>, vector<8x16xf32>
    %c0_4 = arith.constant 0 : index
    %c0_5 = arith.constant 0 : index
    %3 = vector.load %arg1[%c0_4, %c0_5] : memref<8x128xf32, #tpu.memory_space<vmem>>, vector<8x128xf32>
    %cst = arith.constant dense<0.000000e+00> : vector<8x128xf32>
    %4 = tpu.matmul %2, %0, %cst {dimension_numbers = #tpu.dot_dimension_numbers<[1], [0], [0], [1], [0, 0, 1, 1], [], []>} : vector<8x16xf32>, vector<16x128xf32>, vector<8x128xf32> -> vector<8x128xf32>
    %cst_6 = arith.constant dense<0.000000e+00> : vector<8x128xf32>
    %5 = tpu.matmul %3, %1, %cst_6 {dimension_numbers = #tpu.dot_dimension_numbers<[1], [0], [0], [1], [0, 0, 1, 1], [], []>} : vector<8x128xf32>, vector<128x128xf32>, vector<8x128xf32> -> vector<8x128xf32>
    %6 = arith.addf %4, %5 : vector<8x128xf32>
    %c0_7 = arith.constant 0 : index
    %c0_8 = arith.constant 0 : index
    %7 = vector.load %arg3[%c0_7, %c0_8] : memref<1x128xf32, #tpu.memory_space<vmem>>, vector<1x128xf32>
    %8 = vector.broadcast %7 : vector<1x128xf32> to vector<8x128xf32>
    %9 = arith.addf %6, %8 : vector<8x128xf32>
    %10 = math.tanh %9 : vector<8x128xf32>
    %c0_9 = arith.constant 0 : index
    %c0_10 = arith.constant 0 : index
    %11 = vector.load %arg4[%c0_9, %c0_10] : memref<8x128xf32, #tpu.memory_space<vmem>>, vector<8x128xf32>
    tpu.vector_store %arg4[%c0_9, %c0_10], %10 {strides = array<i32>} : memref<8x128xf32, #tpu.memory_space<vmem>>, vector<8x128xf32>,
    return
  }
}

</mosaic_0001>

<llo_original>
// kernel: rnn_simple_cell.1
$region0: #{rnn_simple_cell.1}
  #allocation0 [shape = 'u32[]', space=smem, size = 0x4, offset = 0x4, fixed_abs, tag = 'smem constant byte address 0x4 - core index']
  #allocation1 [shape = 'u32[72,128]{1,0:T(1,128)}', space=vmem, size = 0x9000, scoped, tag = 'internal scratch']
  %s0 = inlined_call_operand.vmem [shape: f32[8,16], index: 0, kind: input, shape index: {}]
  %s1 = inlined_call_operand.vmem [shape: f32[8,128], index: 1, kind: input, shape index: {}]
  %s2 = inlined_call_operand.vmem [shape: f32[144,128], index: 2, kind: input, shape index: {}]
  %s3 = inlined_call_operand.vmem [shape: f32[1,128], index: 3, kind: input, shape index: {}]
  %s4 = inlined_call_operand.hbm [shape: f32[8,128], index: 4, kind: output, shape index: {}]
  %s5 = sld [smem:[#allocation0]]
  $region26: #{rnn_simple_cell.1} parent=0
    _
  %s7 = ssub.s32 1, %s5
  %s8 = scalar_select 0, %s7, %s5
  $region1: #{rnn_simple_cell.1} parent=0
    #allocation2 [shape = 'u8[4096]{0}', space=vmem, size = 0x1000, scoped, tag = 'output window, operand 0, single buffered']
    #allocation3 [shape = 's32[1]{0}', space=sflag, size = 0x4, scoped, tag = 'scoped memory for rnn_simple_cell.1']
    %9 = vsyncpa [#allocation3], 0
    // Predicated region
    $region2: #{rnn_simple_cell.1} parent=1 // pred_check
      _
    $region3: #{rnn_simple_cell.1} parent=1 // pred_check_branch
      %11 = sbr.rel (0) target = $region5
    $region4: #{rnn_simple_cell.1} parent=1 // pred_region
      _
    $region5: #{rnn_simple_cell.1} parent=1 // pred_fallthru
      _
    // Predicated region
    $region6: #{rnn_simple_cell.1} parent=1 // pred_check
      _
    $region7: #{rnn_simple_cell.1} parent=1 // pred_check_branch
      %13 = sbr.rel (0) target = $region9
    $region8: #{rnn_simple_cell.1} parent=1 // pred_region
      _
    $region9: #{rnn_simple_cell.1} parent=1 // pred_fallthru
      _
    // Predicated region
    $region10: #{rnn_simple_cell.1} parent=1 // pred_check
      _
    $region11: #{rnn_simple_cell.1} parent=1 // pred_check_branch
      %15 = sbr.rel (0) target = $region13
    $region12: #{rnn_simple_cell.1} parent=1 // pred_region
      _
    $region13: #{rnn_simple_cell.1} parent=1 // pred_fallthru
      _
    // Predicated region
    $region14: #{rnn_simple_cell.1} parent=1 // pred_check
      _
    $region15: #{rnn_simple_cell.1} parent=1 // pred_check_branch
      %17 = sbr.rel (0) target = $region17
    $region16: #{rnn_simple_cell.1} parent=1 // pred_region
      _
    $region17: #{rnn_simple_cell.1} parent=1 // pred_fallthru
      _
    %v18 = vld [vmem:[%s2] sm:$0xff]
    %v19 = vld [vmem:[%s2 + $0x8] sm:$0xff]
    %v20 = vld [vmem:[%s2 + $0x10] sm:$0xff]
    %v21 = vld [vmem:[%s2 + $0x18] sm:$0xff]
    %v22 = vld [vmem:[%s2 + $0x20] sm:$0xff]
    %v23 = vld [vmem:[%s2 + $0x28] sm:$0xff]
    %v24 = vld [vmem:[%s2 + $0x30] sm:$0xff]
    %v25 = vld [vmem:[%s2 + $0x38] sm:$0xff]
    %v26 = vld [vmem:[%s2 + $0x40] sm:$0xff]
    %v27 = vld [vmem:[%s2 + $0x48] sm:$0xff]
    %v28 = vld [vmem:[%s2 + $0x50] sm:$0xff]
    %v29 = vld [vmem:[%s2 + $0x58] sm:$0xff]
    %v30 = vld [vmem:[%s2 + $0x60] sm:$0xff]
    %v31 = vld [vmem:[%s2 + $0x68] sm:$0xff]
    %v32 = vld [vmem:[%s2 + $0x70] sm:$0xff]
    %v33 = vld [vmem:[%s2 + $0x78] sm:$0xff]
    %v34 = vld [vmem:[%s2 + $0x80] sm:$0xff]
    %v35 = vld [vmem:[%s2 + $0x88] sm:$0xff]
    %v36 = vld [vmem:[%s0] sm:$0xff]
    %v37 = vld [vmem:[%s1] sm:$0xff]
    %38 = vmatpush.msra.mxu0 %v35
    %39 = vmatpush.msra.mxu0 %v34
    %40 = vmatpush.msra.mxu0 %v33
    %41 = vmatpush.msra.mxu0 %v32
    %42 = vmatpush.msra.mxu0 %v31
    %43 = vmatpush.msra.mxu0 %v30
    %44 = vmatpush.msra.mxu0 %v29
    %45 = vmatpush.msra.mxu0 %v28
    %46 = vmatpush.msra.mxu0 %v27
    %47 = vmatpush.msra.mxu0 %v26
    %48 = vmatpush.msra.mxu0 %v25
    %49 = vmatpush.msra.mxu0 %v24
    %50 = vmatpush.msra.mxu0 %v23
    %51 = vmatpush.msra.mxu0 %v22
    %52 = vmatpush.msra.mxu0 %v21
    %53 = vmatpush.msra.mxu0 %v20
    %54 = vmatmul.f32.gmra.mxu0 %v37
    %v55 = vpop.f32.mrf.mxu0
    %v56 = vadd.f32 0.0, %v55
    %57 = vdwg.mxu0
    %vm58 = vcmask 130048
    %v60 = vsel %vm58, %v36, 0
    %62 = vmatpush.msra.mxu0 0.0
    %63 = vmatpush.msra.mxu0 0.0
    %64 = vmatpush.msra.mxu0 0.0
    %65 = vmatpush.msra.mxu0 0.0
    %66 = vmatpush.msra.mxu0 0.0
    %67 = vmatpush.msra.mxu0 0.0
    %68 = vmatpush.msra.mxu0 0.0
    %69 = vmatpush.msra.mxu0 0.0
    %70 = vmatpush.msra.mxu0 0.0
    %71 = vmatpush.msra.mxu0 0.0
    %72 = vmatpush.msra.mxu0 0.0
    %73 = vmatpush.msra.mxu0 0.0
    %74 = vmatpush.msra.mxu0 0.0
    %75 = vmatpush.msra.mxu0 0.0
    %76 = vmatpush.msra.mxu0 %v19
    %77 = vmatpush.msra.mxu0 %v18
    %78 = vmatmul.f32.gmra.mxu0 %v60
    %v79 = vpop.f32.mrf.mxu0
    %v80 = vadd.f32 %v56, %v79
    %81 = vdwg.mxu0
    %v82 = vld [vmem:[%s3] sm:$0x1]
    %v84 = vperm.slane %v82, 0
    %v86 = vadd.f32 %v80, %v84
    %v87 = vtanh.pop %v86
    %88 = vst [vmem:[#allocation2] sm:$0xff] %v87
    // Predicated region
    $region18: #{rnn_simple_cell.1} parent=1 // pred_check
      _
    $region19: #{rnn_simple_cell.1} parent=1 // pred_check_branch
      %90 = sbr.rel (0) target = $region21
    $region20: #{rnn_simple_cell.1} parent=1 // pred_region
      %92 = vsyncadd [#allocation3], 0
      %s94 = sshll.u32 [#allocation2], 4
      %s95 = int_to_ptr.vmem [resolvable:$true] %s94
      %s96 = sshll.u32 %s4, 4
      %s97 = int_to_ptr.hbm [resolvable:$true] %s96
      %99 = dma.vmem_to_hbm [thread:$0]  %s95, 128, %s97, [#allocation3]
    $region21: #{rnn_simple_cell.1} parent=1 // pred_fallthru
      _
    // Predicated region
    $region22: #{rnn_simple_cell.1} parent=1 // pred_check
      _
    $region23: #{rnn_simple_cell.1} parent=1 // pred_check_branch
      %101 = sbr.rel (0) target = $region25
    $region24: #{rnn_simple_cell.1} parent=1 // pred_region
      %103 = dma.done [#allocation3], 128
    $region25: #{rnn_simple_cell.1} parent=1 // pred_fallthru
      _
    %104 = vsyncpa [#allocation3], 1

</llo_original>
